<compile_context>
chip_gen: v7x
topology: tpu7x:2x2x1
jax: 0.10.0
libtpu: 0.0.40
codegen_flags: <defaults>
</compile_context>

<pallas_src>
import math

import jax
import jax.numpy as jnp
from jax.experimental import pallas as pl
from jax.experimental.pallas import tpu as pltpu


def _stage1_kernel(a_ref, xw1_ref, w2_ref, z1_ref, acc_ref):
    """acc[i] += A[i,k] @ xw1[k]; at last k: z1[i] = (relu(acc[i]) @ W2)."""
    k = pl.program_id(1)

    @pl.when(k == 0)
    def _():
        acc_ref[...] = jnp.zeros_like(acc_ref)

    acc_ref[...] += jnp.dot(a_ref[...], xw1_ref[...],
                            preferred_element_type=jnp.float32)

    @pl.when(k == pl.num_programs(1) - 1)
    def _():
        l1 = jnp.maximum(acc_ref[...], 0.0).astype(jnp.bfloat16)
        z1_ref[...] = jnp.dot(
            l1, w2_ref[...], preferred_element_type=jnp.float32
        ).astype(z1_ref.dtype)


def _stage2_kernel(a_ref, z1_ref, x_ref, w3_ref, out_ref, acc_ref):
    """acc[i] = X[i] @ W3 (k==0) + sum_k A[i,k] @ z1[k]; at last k: relu+store."""
    k = pl.program_id(1)

    @pl.when(k == 0)
    def _():
        acc_ref[...] = jnp.dot(x_ref[...], w3_ref[...],
                               preferred_element_type=jnp.float32)

    acc_ref[...] += jnp.dot(a_ref[...], z1_ref[...],
                            preferred_element_type=jnp.float32)

    @pl.when(k == pl.num_programs(1) - 1)
    def _():
        out_ref[...] = jnp.maximum(acc_ref[...], 0.0).astype(out_ref.dtype)


def _round_up(v, m):
    return ((v + m - 1) // m) * m


def _pad2(a, rows, cols):
    return jnp.pad(a, ((0, rows - a.shape[0]), (0, cols - a.shape[1])))


def _pick_tiles(n, row_tile, k_tile):
    """Row tile (multiple of 128), K tile (multiple of tm, divides n_pad)."""
    tm = min(row_tile, _round_up(n, 128))
    n_pad = _round_up(n, tm)
    blocks = n_pad // tm
    d = min(max(k_tile // tm, 1), blocks)
    while blocks % d:
        d -= 1
    tk = tm * d
    return tm, tk, n_pad


def _vmem_limit_bytes():
    """~7/8 of physical VMEM, capped at 100 MiB; safe fallback = 56 MiB."""
    cap = None
    try:
        info = pltpu.get_tpu_info()
        for name in ("vmem_capacity_bytes", "vmem_size_bytes", "vmem_bytes"):
            cap = getattr(info, name, None)
            if cap:
                break
    except Exception:
        cap = None
    if not cap:
        cap = 64 * 1024 * 1024  # conservative: v7x-class per-TC VMEM
    return int(min(cap * 7 // 8, 100 * 1024 * 1024))


def sp_skip_gcn(ahat, x, w1, w2, w3, *, row_tile=512, k_tile=4096):
    """Pallas implementation of Sp_Skip_GCN.forward (dense Ahat, ReLU)."""
    n = ahat.shape[0]
    f = x.shape[1]
    h1 = w1.shape[1]
    h2 = w2.shape[1]
    assert ahat.shape == (n, n)
    assert x.shape == (n, f)
    assert w1.shape == (f, h1)
    assert w2.shape == (h1, h2)
    # The module's skip add requires the W_feat output width to equal H2.
    assert w3.shape == (f, h2), (
        "skip branch needs W3: (F, H2) (layer_1_feats == layer_2_feats)")

    bf16 = jnp.bfloat16
    fp = _round_up(f, 16)                    # bf16 sublane packing
    hp = _round_up(max(h1, h2), 128)         # lane-dense hidden dim
    tm, tk, n_pad = _pick_tiles(n, row_tile, k_tile)
    grid = (n_pad // tm, n_pad // tk)

    # Cast to bf16 *before* padding (no padded f32 temp of the (N, N) array).
    a_p = _pad2(ahat.astype(bf16), n_pad, n_pad)
    x_bf = x.astype(bf16)
    x_p = _pad2(x_bf, n_pad, fp)
    w2_p = _pad2(w2.astype(bf16), hp, hp)
    w3_p = _pad2(w3.astype(bf16), fp, hp)

    # Hoisted once: xw1 = X @ W1 (bf16 operands, f32 acc, stored bf16).
    xw1 = jnp.dot(x_bf, w1.astype(bf16),
                  preferred_element_type=jnp.float32).astype(bf16)
    xw1_p = _pad2(xw1, n_pad, hp)

    params = pltpu.CompilerParams(
        dimension_semantics=("parallel", "arbitrary"),
        vmem_limit_bytes=_vmem_limit_bytes(),
    )

    # Stage 1: z1 = relu(A @ xw1) @ W2, tiled (row, K).
    z1 = pl.pallas_call(
        _stage1_kernel,
        out_shape=jax.ShapeDtypeStruct((n_pad, hp), bf16),
        grid_spec=pltpu.PrefetchScalarGridSpec(
            num_scalar_prefetch=0,
            grid=grid,
            in_specs=[
                pl.BlockSpec((tm, tk), lambda i, k: (i, k)),   # A (streamed)
                pl.BlockSpec((tk, hp), lambda i, k: (k, 0)),   # xw1 (streamed)
                pl.BlockSpec((hp, hp), lambda i, k: (0, 0)),   # W2 (tiny, resident)
            ],
            out_specs=pl.BlockSpec((tm, hp), lambda i, k: (i, 0)),
            scratch_shapes=[pltpu.VMEM((tm, hp), jnp.float32)],
        ),
        compiler_params=params,
    )(a_p, xw1_p, w2_p)

    # Stage 2: out = relu(A @ z1 + X @ W3), tiled (row, K).
    out_p = pl.pallas_call(
        _stage2_kernel,
        out_shape=jax.ShapeDtypeStruct((n_pad, hp), jnp.float32),
        grid_spec=pltpu.PrefetchScalarGridSpec(
            num_scalar_prefetch=0,
            grid=grid,
            in_specs=[
                pl.BlockSpec((tm, tk), lambda i, k: (i, k)),   # A (streamed)
                pl.BlockSpec((tk, hp), lambda i, k: (k, 0)),   # z1 (streamed)
                pl.BlockSpec((tm, fp), lambda i, k: (i, 0)),   # X row tile
                pl.BlockSpec((fp, hp), lambda i, k: (0, 0)),   # W3 (tiny, resident)
            ],
            out_specs=pl.BlockSpec((tm, hp), lambda i, k: (i, 0)),
            scratch_shapes=[pltpu.VMEM((tm, hp), jnp.float32)],
        ),
        compiler_params=params,
    )(a_p, z1, x_p, w3_p)

    return out_p[:n, :h2]


def _reset_param(key, shape):
    # mimic u.reset_param: uniform(-stdv, stdv) with stdv = 1/sqrt(fan_out)
    stdv = 1.0 / math.sqrt(shape[1])
    return jax.random.uniform(key, shape, jnp.float32, minval=-stdv, maxval=stdv)


if __name__ == "__main__":
    # Small shapes: N nodes, F input feats, H1 == H2 hidden feats.
    N, F, H1 = 64, 16, 32
    H2 = H1  # skip branch (W_feat) forces layer_2_feats == layer_1_feats

    key = jax.random.PRNGKey(0)
    k_a, k_x, k_w1, k_w2, k_w3 = jax.random.split(key, 5)

    # Dense, row-normalized adjacency-with-self-loops (Ahat).
    adj = (jax.random.uniform(k_a, (N, N)) < 0.1).astype(jnp.float32)
    adj = adj + jnp.eye(N, dtype=jnp.float32)
    ahat = adj / jnp.sum(adj, axis=1, keepdims=True)

    x = jax.random.normal(k_x, (N, F), jnp.float32)
    w1 = _reset_param(k_w1, (F, H1))   # feats_per_node x layer_1_feats
    w2 = _reset_param(k_w2, (H1, H2))  # layer_1_feats x layer_2_feats
    w3 = _reset_param(k_w3, (F, H2))   # W_feat: feats_per_node x layer_1_feats

    out = jax.block_until_ready(sp_skip_gcn(ahat, x, w1, w2, w3))
    assert out.shape == (N, H2)

    # Reference 1: mimic the kernel's bf16 casts (f32 accumulation) -> tight check.
    r = lambda t: t.astype(jnp.bfloat16).astype(jnp.float32)
    xw1_r = r(x) @ r(w1)
    l1_r = jnp.maximum(r(ahat) @ r(xw1_r), 0.0)
    z1_r = r(r(l1_r) @ r(w2))
    ref_bf = jnp.maximum(r(ahat) @ z1_r + r(x) @ r(w3), 0.0)
    assert jnp.allclose(out, ref_bf, atol=5e-3, rtol=5e-3), (
        float(jnp.max(jnp.abs(out - ref_bf))))

    # Reference 2: pure f32 module semantics -> loose check (bf16 MXU operands).
    l1_f = jax.nn.relu(ahat @ (x @ w1))
    ref_f32 = jax.nn.relu(ahat @ (l1_f @ w2) + x @ w3)
    assert jnp.allclose(out, ref_f32, atol=5e-2, rtol=5e-2), (
        float(jnp.max(jnp.abs(out - ref_f32))))

    print("KERNEL_OK")
</pallas_src>

<mosaic_0001>
module attributes {stable_mosaic.version = 11 : i64} {
  func.func @_stage1_kernel(%arg0: i32, %arg1: i32, %arg2: memref<128x128xbf16, #tpu.memory_space<vmem>>, %arg3: memref<128x128xbf16, #tpu.memory_space<vmem>>, %arg4: memref<128x128xbf16, #tpu.memory_space<vmem>>, %arg5: memref<128x128xbf16, #tpu.memory_space<vmem>>, %arg6: memref<128x128xf32, #tpu.memory_space<vmem>>) attributes {dimension_semantics = [#tpu.dimension_semantics<parallel>, #tpu.dimension_semantics<arbitrary>], iteration_bounds = array<i64: 1, 1>, scalar_prefetch = 0 : i64, scratch_operands = 1 : i64, tpu.core_type = #tpu.core_type<tc>, window_params = [{transform_indices = @transform_0, window_bounds = array<i64: 128, 128>}, {transform_indices = @transform_1, window_bounds = array<i64: 128, 128>}, {pipeline_mode = #tpu.pipeline_mode<synchronous>, transform_indices = @transform_2, window_bounds = array<i64: 128, 128>}, {transform_indices = @transform_3, window_bounds = array<i64: 128, 128>}]} {
    %c0_i32 = arith.constant 0 : i32
    %0 = arith.cmpi eq, %arg1, %c0_i32 : i32
    %1 = arith.extui %0 : i1 to i32
    %c0_i32_0 = arith.constant 0 : i32
    %2 = arith.cmpi ne, %1, %c0_i32_0 : i32
    scf.if %2 {
      %cst_10 = arith.constant 0.000000e+00 : f32
      %12 = vector.broadcast %cst_10 : f32 to vector<128x128xf32>
      %c0_11 = arith.constant 0 : index
      %c0_12 = arith.constant 0 : index
      %13 = vector.load %arg6[%c0_11, %c0_12] : memref<128x128xf32, #tpu.memory_space<vmem>>, vector<128x128xf32>
      tpu.vector_store %arg6[%c0_11, %c0_12], %12 {strides = array<i32>} : memref<128x128xf32, #tpu.memory_space<vmem>>, vector<128x128xf32>,
    } else {
    }
    %c0 = arith.constant 0 : index
    %c0_1 = arith.constant 0 : index
    %3 = vector.load %arg6[%c0, %c0_1] : memref<128x128xf32, #tpu.memory_space<vmem>>, vector<128x128xf32>
    %c0_2 = arith.constant 0 : index
    %c0_3 = arith.constant 0 : index
    %4 = vector.load %arg2[%c0_2, %c0_3] : memref<128x128xbf16, #tpu.memory_space<vmem>>, vector<128x128xbf16>
    %c0_4 = arith.constant 0 : index
    %c0_5 = arith.constant 0 : index
    %5 = vector.load %arg3[%c0_4, %c0_5] : memref<128x128xbf16, #tpu.memory_space<vmem>>, vector<128x128xbf16>
    %cst = arith.constant dense<0.000000e+00> : vector<128x128xf32>
    %6 = tpu.matmul %4, %5, %cst {dimension_numbers = #tpu.dot_dimension_numbers<[1], [0], [0], [1], [0, 0, 1, 1], [], []>} : vector<128x128xbf16>, vector<128x128xbf16>, vector<128x128xf32> -> vector<128x128xf32>
    %7 = arith.addf %3, %6 : vector<128x128xf32>
    %c0_6 = arith.constant 0 : index
    %c0_7 = arith.constant 0 : index
    %8 = vector.load %arg6[%c0_6, %c0_7] : memref<128x128xf32, #tpu.memory_space<vmem>>, vector<128x128xf32>
    tpu.vector_store %arg6[%c0_6, %c0_7], %7 {strides = array<i32>} : memref<128x128xf32, #tpu.memory_space<vmem>>, vector<128x128xf32>,
    %c0_i32_8 = arith.constant 0 : i32
    %9 = arith.cmpi eq, %arg1, %c0_i32_8 : i32
    %10 = arith.extui %9 : i1 to i32
    %c0_i32_9 = arith.constant 0 : i32
    %11 = arith.cmpi ne, %10, %c0_i32_9 : i32
    scf.if %11 {
      %c0_10 = arith.constant 0 : index
      %c0_11 = arith.constant 0 : index
      %12 = vector.load %arg6[%c0_10, %c0_11] : memref<128x128xf32, #tpu.memory_space<vmem>>, vector<128x128xf32>
      %cst_12 = arith.constant 0.000000e+00 : f32
      %13 = vector.broadcast %cst_12 : f32 to vector<128x128xf32>
      %14 = arith.maximumf %12, %13 : vector<128x128xf32>
      %15 = arith.truncf %14 : vector<128x128xf32> to vector<128x128xbf16>
      %c0_13 = arith.constant 0 : index
      %c0_14 = arith.constant 0 : index
      %16 = vector.load %arg4[%c0_13, %c0_14] : memref<128x128xbf16, #tpu.memory_space<vmem>>, vector<128x128xbf16>
      %cst_15 = arith.constant dense<0.000000e+00> : vector<128x128xf32>
      %17 = tpu.matmul %15, %16, %cst_15 {dimension_numbers = #tpu.dot_dimension_numbers<[1], [0], [0], [1], [0, 0, 1, 1], [], []>} : vector<128x128xbf16>, vector<128x128xbf16>, vector<128x128xf32> -> vector<128x128xf32>
      %18 = arith.truncf %17 : vector<128x128xf32> to vector<128x128xbf16>
      %c0_16 = arith.constant 0 : index
      %c0_17 = arith.constant 0 : index
      %19 = vector.load %arg5[%c0_16, %c0_17] : memref<128x128xbf16, #tpu.memory_space<vmem>>, vector<128x128xbf16>
      tpu.vector_store %arg5[%c0_16, %c0_17], %18 {strides = array<i32>} : memref<128x128xbf16, #tpu.memory_space<vmem>>, vector<128x128xbf16>,
    } else {
    }
    return
  }
  func.func @transform_0(%arg0: i32, %arg1: i32) -> (i32, i32) {
    %c0_i32 = arith.constant 0 : i32
    return %arg0, %arg1 : i32, i32
  }
  func.func @transform_1(%arg0: i32, %arg1: i32) -> (i32, i32) {
    %c0_i32 = arith.constant 0 : i32
    %c0_i32_0 = arith.constant 0 : i32
    return %arg1, %c0_i32 : i32, i32
  }
  func.func @transform_2(%arg0: i32, %arg1: i32) -> (i32, i32) {
    %c0_i32 = arith.constant 0 : i32
    %c0_i32_0 = arith.constant 0 : i32
    %c0_i32_1 = arith.constant 0 : i32
    return %c0_i32, %c0_i32_0 : i32, i32
  }
  func.func @transform_3(%arg0: i32, %arg1: i32) -> (i32, i32) {
    %c0_i32 = arith.constant 0 : i32
    %c0_i32_0 = arith.constant 0 : i32
    return %arg0, %c0_i32 : i32, i32
  }
}

</mosaic_0001>

<llo_original>
// kernel: tpu_custom_call.1
$region0: #{tpu_custom_call.1}
  #allocation0 [shape = 'u32[]', space=smem, size = 0x4, offset = 0x4, fixed_abs, tag = 'smem constant byte address 0x4 - core index']
  #allocation1 [shape = 'u32[144,128]{1,0:T(1,128)}', space=vmem, size = 0x12000, scoped, tag = 'internal scratch']
  #allocation2 [shape = 'f32[128,128]{1,0:T(8,128)}', space=vmem, size = 0x10000, scoped, tag = 'scratch operand']
  %s0 = inlined_call_operand.hbm [shape: bf16[128,128], index: 0, kind: input, shape index: {}]
  %s1 = inlined_call_operand.hbm [shape: bf16[128,128], index: 1, kind: input, shape index: {}]
  %s2 = inlined_call_operand.hbm [shape: bf16[128,128], index: 2, kind: input, shape index: {}]
  %s3 = inlined_call_operand.hbm [shape: bf16[128,128], index: 3, kind: output, shape index: {}]
  %s4 = sld [smem:[#allocation0]]
  $region42: #{tpu_custom_call.1} parent=0
    _
  %s6 = ssub.s32 1, %s4
  %s7 = scalar_select 0, %s6, %s4
  $region1: #{tpu_custom_call.1} parent=0
    #allocation3 [shape = 'u8[32768]{0}', space=vmem, size = 0x8000, scoped, tag = 'input window, operand 0, single buffered']
    #allocation4 [shape = 's32[1]{0}', space=sflag, size = 0x4, scoped, tag = 'scoped memory for tpu_custom_call.1']
    #allocation5 [shape = 's32[1]{0}', space=sflag, size = 0x4, scoped, tag = 'scoped memory for tpu_custom_call.1']
    #allocation6 [shape = 'u8[32768]{0}', space=vmem, size = 0x8000, scoped, tag = 'input window, operand 1, single buffered']
    #allocation7 [shape = 's32[1]{0}', space=sflag, size = 0x4, scoped, tag = 'scoped memory for tpu_custom_call.1']
    #allocation8 [shape = 'u8[32768]{0}', space=vmem, size = 0x8000, scoped, tag = 'input window, operand 2, single buffered']
    #allocation9 [shape = 'u8[32768]{0}', space=vmem, size = 0x8000, scoped, tag = 'output window, operand 0, single buffered']
    %8 = vsyncpa [#allocation4], 0
    %9 = vsyncpa [#allocation7], 0
    %10 = vsyncpa [#allocation5], 0
    // Predicated region
    $region2: #{tpu_custom_call.1} parent=1 // pred_check
      _
    $region3: #{tpu_custom_call.1} parent=1 // pred_check_branch
      %12 = sbr.rel (0) target = $region5
    $region4: #{tpu_custom_call.1} parent=1 // pred_region
      %s14 = ssub.s32 1024, 1024
      %15 = vsyncadd [#allocation4], %s14
      %s16 = sshll.u32 [#allocation3], 4
      %s17 = int_to_ptr.vmem [resolvable:$true] %s16
      %22 = dma.hbm_to_vmem [thread:$0]  %s0, 1024, %s17, [#allocation4], 64, 64, 4
    $region5: #{tpu_custom_call.1} parent=1 // pred_fallthru
      _
    // Predicated region
    $region6: #{tpu_custom_call.1} parent=1 // pred_check
      _
    $region7: #{tpu_custom_call.1} parent=1 // pred_check_branch
      %24 = sbr.rel (0) target = $region9
    $region8: #{tpu_custom_call.1} parent=1 // pred_region
      %s26 = ssub.s32 1024, 1024
      %27 = vsyncadd [#allocation7], %s26
      %s28 = sshll.u32 [#allocation6], 4
      %s29 = int_to_ptr.vmem [resolvable:$true] %s28
      %34 = dma.hbm_to_vmem [thread:$0]  %s1, 1024, %s29, [#allocation7], 64, 64, 4
    $region9: #{tpu_custom_call.1} parent=1 // pred_fallthru
      _
    // Predicated region
    $region10: #{tpu_custom_call.1} parent=1 // pred_check
      _
    $region11: #{tpu_custom_call.1} parent=1 // pred_check_branch
      %36 = sbr.rel (0) target = $region13
    $region12: #{tpu_custom_call.1} parent=1 // pred_region
      %s38 = ssub.s32 1024, 1024
      %39 = vsyncadd [#allocation7], %s38
      %s40 = sshll.u32 [#allocation8], 4
      %s41 = int_to_ptr.vmem [resolvable:$true] %s40
      %46 = dma.hbm_to_vmem [thread:$0]  %s2, 1024, %s41, [#allocation7], 64, 64, 4
    $region13: #{tpu_custom_call.1} parent=1 // pred_fallthru
      _
    // Predicated region
    $region14: #{tpu_custom_call.1} parent=1 // pred_check
      _
    $region15: #{tpu_custom_call.1} parent=1 // pred_check_branch
      %48 = sbr.rel (0) target = $region17
    $region16: #{tpu_custom_call.1} parent=1 // pred_region
      %49 = dma.done [#allocation4], 1024
    $region17: #{tpu_custom_call.1} parent=1 // pred_fallthru
      _
    // Predicated region
    $region18: #{tpu_custom_call.1} parent=1 // pred_check
      _
    $region19: #{tpu_custom_call.1} parent=1 // pred_check_branch
      %51 = sbr.rel (0) target = $region21
    $region20: #{tpu_custom_call.1} parent=1 // pred_region
      %52 = dma.done [#allocation7], 1024
    $region21: #{tpu_custom_call.1} parent=1 // pred_fallthru
      _
    // Predicated region
    $region22: #{tpu_custom_call.1} parent=1 // pred_check
      _
    $region23: #{tpu_custom_call.1} parent=1 // pred_check_branch
      %54 = sbr.rel (0) target = $region25
    $region24: #{tpu_custom_call.1} parent=1 // pred_region
      %55 = dma.done [#allocation7], 1024
    $region25: #{tpu_custom_call.1} parent=1 // pred_fallthru
      _
    %p57 = scmp.eq.s32.totalorder 0, 0
    // Predicated region
    $region26: #{tpu_custom_call.1} parent=1 // pred_check
      %p58 = pneg %p57
    $region27: #{tpu_custom_call.1} parent=1 // pred_check_branch
      %60 = sbr.rel (%p58) target = $region29
    $region28: #{tpu_custom_call.1} parent=1 // pred_region
      %61 = vst [vmem:[#allocation2] sm:$0xff] 0.0
      %62 = vst [vmem:[#allocation2 + $0x8] sm:$0xff] 0.0
      %63 = vst [vmem:[#allocation2 + $0x10] sm:$0xff] 0.0
      %64 = vst [vmem:[#allocation2 + $0x18] sm:$0xff] 0.0
      %65 = vst [vmem:[#allocation2 + $0x20] sm:$0xff] 0.0
      %66 = vst [vmem:[#allocation2 + $0x28] sm:$0xff] 0.0
      %67 = vst [vmem:[#allocation2 + $0x30] sm:$0xff] 0.0
      %68 = vst [vmem:[#allocation2 + $0x38] sm:$0xff] 0.0
      %69 = vst [vmem:[#allocation2 + $0x40] sm:$0xff] 0.0
      %70 = vst [vmem:[#allocation2 + $0x48] sm:$0xff] 0.0
      %71 = vst [vmem:[#allocation2 + $0x50] sm:$0xff] 0.0
      %72 = vst [vmem:[#allocation2 + $0x58] sm:$0xff] 0.0
      %73 = vst [vmem:[#allocation2 + $0x60] sm:$0xff] 0.0
      %74 = vst [vmem:[#allocation2 + $0x68] sm:$0xff] 0.0
      %75 = vst [vmem:[#allocation2 + $0x70] sm:$0xff] 0.0
      %76 = vst [vmem:[#allocation2 + $0x78] sm:$0xff] 0.0
    $region29: #{tpu_custom_call.1} parent=1 // pred_fallthru
      _
    %v77 = vld [vmem:[#allocation2] sm:$0xff]
    %v78 = vld [vmem:[#allocation2 + $0x8] sm:$0xff]
    %v79 = vld [vmem:[#allocation2 + $0x10] sm:$0xff]
    %v80 = vld [vmem:[#allocation2 + $0x18] sm:$0xff]
    %v81 = vld [vmem:[#allocation2 + $0x20] sm:$0xff]
    %v82 = vld [vmem:[#allocation2 + $0x28] sm:$0xff]
    %v83 = vld [vmem:[#allocation2 + $0x30] sm:$0xff]
    %v84 = vld [vmem:[#allocation2 + $0x38] sm:$0xff]
    %v85 = vld [vmem:[#allocation2 + $0x40] sm:$0xff]
    %v86 = vld [vmem:[#allocation2 + $0x48] sm:$0xff]
    %v87 = vld [vmem:[#allocation2 + $0x50] sm:$0xff]
    %v88 = vld [vmem:[#allocation2 + $0x58] sm:$0xff]
    %v89 = vld [vmem:[#allocation2 + $0x60] sm:$0xff]
    %v90 = vld [vmem:[#allocation2 + $0x68] sm:$0xff]
    %v91 = vld [vmem:[#allocation2 + $0x70] sm:$0xff]
    %v92 = vld [vmem:[#allocation2 + $0x78] sm:$0xff]
    %v93 = vld [vmem:[#allocation3] sm:$0xf]
    %v94 = vld [vmem:[#allocation3 + $0x4] sm:$0xf]
    %v95 = vld [vmem:[#allocation3 + $0x8] sm:$0xf]
    %v96 = vld [vmem:[#allocation3 + $0xc] sm:$0xf]
    %v97 = vld [vmem:[#allocation3 + $0x10] sm:$0xf]
    %v98 = vld [vmem:[#allocation3 + $0x14] sm:$0xf]
    %v99 = vld [vmem:[#allocation3 + $0x18] sm:$0xf]
    %v100 = vld [vmem:[#allocation3 + $0x1c] sm:$0xf]
    %v101 = vld [vmem:[#allocation3 + $0x20] sm:$0xf]
    %v102 = vld [vmem:[#allocation3 + $0x24] sm:$0xf]
    %v103 = vld [vmem:[#allocation3 + $0x28] sm:$0xf]
    %v104 = vld [vmem:[#allocation3 + $0x2c] sm:$0xf]
    %v105 = vld [vmem:[#allocation3 + $0x30] sm:$0xf]
    %v106 = vld [vmem:[#allocation3 + $0x34] sm:$0xf]
    %v107 = vld [vmem:[#allocation3 + $0x38] sm:$0xf]
    %v108 = vld [vmem:[#allocation3 + $0x3c] sm:$0xf]
    %v109 = vld [vmem:[#allocation6] sm:$0xf]
    %v110 = vld [vmem:[#allocation6 + $0x4] sm:$0xf]
    %v111 = vld [vmem:[#allocation6 + $0x8] sm:$0xf]
    %v112 = vld [vmem:[#allocation6 + $0xc] sm:$0xf]
    %v113 = vld [vmem:[#allocation6 + $0x10] sm:$0xf]
    %v114 = vld [vmem:[#allocation6 + $0x14] sm:$0xf]
    %v115 = vld [vmem:[#allocation6 + $0x18] sm:$0xf]
    %v116 = vld [vmem:[#allocation6 + $0x1c] sm:$0xf]
    %v117 = vld [vmem:[#allocation6 + $0x20] sm:$0xf]
    %v118 = vld [vmem:[#allocation6 + $0x24] sm:$0xf]
    %v119 = vld [vmem:[#allocation6 + $0x28] sm:$0xf]
    %v120 = vld [vmem:[#allocation6 + $0x2c] sm:$0xf]
    %v121 = vld [vmem:[#allocation6 + $0x30] sm:$0xf]
    %v122 = vld [vmem:[#allocation6 + $0x34] sm:$0xf]
    %v123 = vld [vmem:[#allocation6 + $0x38] sm:$0xf]
    %v124 = vld [vmem:[#allocation6 + $0x3c] sm:$0xf]
    %v141 = vunpack.c.l.b16 %v93
    %v142 = vunpack.c.l.b16 %v94
    %v143 = vunpack.c.l.b16 %v95
    %v144 = vunpack.c.l.b16 %v96
    %v145 = vunpack.c.l.b16 %v97
    %v146 = vunpack.c.l.b16 %v98
    %v147 = vunpack.c.l.b16 %v99
    %v148 = vunpack.c.l.b16 %v100
    %v149 = vunpack.c.l.b16 %v101
    %v150 = vunpack.c.l.b16 %v102
    %v151 = vunpack.c.l.b16 %v103
    %v152 = vunpack.c.l.b16 %v104
    %v153 = vunpack.c.l.b16 %v105
    %v154 = vunpack.c.l.b16 %v106
    %v155 = vunpack.c.l.b16 %v107
    %v156 = vunpack.c.l.b16 %v108
    %v157 = vpack.c.b16 %v142, %v141
    %v158 = vpack.c.b16 %v144, %v143
    %v159 = vpack.c.b16 %v146, %v145
    %v160 = vpack.c.b16 %v148, %v147
    %v161 = vpack.c.b16 %v150, %v149
    %v162 = vpack.c.b16 %v152, %v151
    %v163 = vpack.c.b16 %v154, %v153
    %v164 = vpack.c.b16 %v156, %v155
    %v189 = vunpack.c.l.b16 %v109
    %v190 = vunpack.c.l.b16 %v110
    %v191 = vunpack.c.l.b16 %v111
    %v192 = vunpack.c.l.b16 %v112
    %v193 = vunpack.c.l.b16 %v113
    %v194 = vunpack.c.l.b16 %v114
    %v195 = vunpack.c.l.b16 %v115
    %v196 = vunpack.c.l.b16 %v116
    %v197 = vunpack.c.l.b16 %v117
    %v198 = vunpack.c.l.b16 %v118
    %v199 = vunpack.c.l.b16 %v119
    %v200 = vunpack.c.l.b16 %v120
    %v201 = vunpack.c.l.b16 %v121
    %v202 = vunpack.c.l.b16 %v122
    %v203 = vunpack.c.l.b16 %v123
    %v204 = vunpack.c.l.b16 %v124
    %v205 = vpack.c.b16 %v190, %v189
    %v206 = vpack.c.b16 %v192, %v191
    %v207 = vpack.c.b16 %v194, %v193
    %v208 = vpack.c.b16 %v196, %v195
    %v209 = vpack.c.b16 %v198, %v197
    %v210 = vpack.c.b16 %v200, %v199
    %v211 = vpack.c.b16 %v202, %v201
    %v212 = vpack.c.b16 %v204, %v203
    %221 = vmatprep.subr.bf16.mxu0 0
    %222 = vmatpush1.bf16.msra.mxu0 %v205
    %223 = vmatprep.subr.bf16.mxu0 0
    %224 = vmatpush1.bf16.msra.mxu0 %v206
    %225 = vmatprep.subr.bf16.mxu0 0
    %226 = vmatpush1.bf16.msra.mxu0 %v207
    %227 = vmatprep.subr.bf16.mxu0 0
    %228 = vmatpush1.bf16.msra.mxu0 %v208
    %229 = vmatprep.subr.bf16.mxu0 0
    %230 = vmatpush1.bf16.msra.mxu0 %v209
    %231 = vmatprep.subr.bf16.mxu0 0
    %232 = vmatpush1.bf16.msra.mxu0 %v210
    %233 = vmatprep.subr.bf16.mxu0 0
    %234 = vmatpush1.bf16.msra.mxu0 %v211
    %235 = vmatprep.subr.bf16.mxu0 0
    %236 = vmatpush1.bf16.msra.mxu0 %v212
    %237 = vmatprep.subr.bf16.mxu0 0
    %238 = vmatpush1.bf16.msra.mxu0 0
    %239 = vmatprep.subr.bf16.mxu0 0
    %240 = vmatpush1.bf16.msra.mxu0 0
    %241 = vmatprep.subr.bf16.mxu0 0
    %242 = vmatpush1.bf16.msra.mxu0 0
    %243 = vmatprep.subr.bf16.mxu0 0
    %244 = vmatpush1.bf16.msra.mxu0 0
    %245 = vmatprep.subr.bf16.mxu0 0
    %246 = vmatpush1.bf16.msra.mxu0 0
    %247 = vmatprep.subr.bf16.mxu0 0
    %248 = vmatpush1.bf16.msra.mxu0 0
    %249 = vmatprep.subr.bf16.mxu0 0
    %250 = vmatpush1.bf16.msra.mxu0 0
    %251 = vmatprep.subr.bf16.mxu0 0
    %252 = vmatpush1.bf16.msra.mxu0 0
    %253 = vmatprep.mubr.bf16.mxu0 0
    %254 = vmatmul.mubr.bf16.gmra.mrb[0].mxu0 %v157
    %v255 = vpop.f32.mrb[0].mxu0
    %v256 = vadd.f32 0.0, %v255
    %v257 = vpop.f32.mrb[0].mxu0
    %v258 = vpop.f32.mrb[0].mxu0
    %v259 = vadd.f32 0.0, %v258
    %v260 = vpop.f32.mrb[0].mxu0
    %261 = vmatprep.mubr.bf16.mxu0 0
    %262 = vmatmul.mubr.bf16.gmra.mrb[0].mxu0 %v158
    %v263 = vpop.f32.mrb[0].mxu0
    %v264 = vadd.f32 0.0, %v263
    %v265 = vpop.f32.mrb[0].mxu0
    %v266 = vpop.f32.mrb[0].mxu0
    %v267 = vadd.f32 0.0, %v266
    %v268 = vpop.f32.mrb[0].mxu0
    %269 = vmatprep.mubr.bf16.mxu0 0
    %270 = vmatmul.mubr.bf16.gmra.mrb[0].mxu0 %v159
    %v271 = vpop.f32.mrb[0].mxu0
    %v272 = vadd.f32 0.0, %v271
    %v273 = vpop.f32.mrb[0].mxu0
    %v274 = vpop.f32.mrb[0].mxu0
    %v275 = vadd.f32 0.0, %v274
    %v276 = vpop.f32.mrb[0].mxu0
    %277 = vmatprep.mubr.bf16.mxu0 0
    %278 = vmatmul.mubr.bf16.gmra.mrb[0].mxu0 %v160
    %v279 = vpop.f32.mrb[0].mxu0
    %v280 = vadd.f32 0.0, %v279
    %v281 = vpop.f32.mrb[0].mxu0
    %v282 = vpop.f32.mrb[0].mxu0
    %v283 = vadd.f32 0.0, %v282
    %v284 = vpop.f32.mrb[0].mxu0
    %285 = vmatprep.mubr.bf16.mxu0 0
    %286 = vmatmul.mubr.bf16.gmra.mrb[0].mxu0 %v161
    %v287 = vpop.f32.mrb[0].mxu0
    %v288 = vadd.f32 0.0, %v287
    %v289 = vpop.f32.mrb[0].mxu0
    %v290 = vpop.f32.mrb[0].mxu0
    %v291 = vadd.f32 0.0, %v290
    %v292 = vpop.f32.mrb[0].mxu0
    %293 = vmatprep.mubr.bf16.mxu0 0
    %294 = vmatmul.mubr.bf16.gmra.mrb[0].mxu0 %v162
    %v295 = vpop.f32.mrb[0].mxu0
    %v296 = vadd.f32 0.0, %v295
    %v297 = vpop.f32.mrb[0].mxu0
    %v298 = vpop.f32.mrb[0].mxu0
    %v299 = vadd.f32 0.0, %v298
    %v300 = vpop.f32.mrb[0].mxu0
    %301 = vmatprep.mubr.bf16.mxu0 0
    %302 = vmatmul.mubr.bf16.gmra.mrb[0].mxu0 %v163
    %v303 = vpop.f32.mrb[0].mxu0
    %v304 = vadd.f32 0.0, %v303
    %v305 = vpop.f32.mrb[0].mxu0
    %v306 = vpop.f32.mrb[0].mxu0
    %v307 = vadd.f32 0.0, %v306
    %v308 = vpop.f32.mrb[0].mxu0
    %309 = vmatprep.mubr.bf16.mxu0 0
    %310 = vmatmul.mubr.bf16.gmra.mrb[0].mxu0 %v164
    %v311 = vpop.f32.mrb[0].mxu0
    %v312 = vadd.f32 0.0, %v311
    %v313 = vpop.f32.mrb[0].mxu0
    %v314 = vpop.f32.mrb[0].mxu0
    %v315 = vadd.f32 0.0, %v314
    %v316 = vpop.f32.mrb[0].mxu0
    %317 = vdwg.mxu0
    %v318 = vadd.f32 %v77, %v256
    %v319 = vadd.f32 %v78, %v259
    %v320 = vadd.f32 %v79, %v264
    %v321 = vadd.f32 %v80, %v267
    %v322 = vadd.f32 %v81, %v272
    %v323 = vadd.f32 %v82, %v275
    %v324 = vadd.f32 %v83, %v280
    %v325 = vadd.f32 %v84, %v283
    %v326 = vadd.f32 %v85, %v288
    %v327 = vadd.f32 %v86, %v291
    %v328 = vadd.f32 %v87, %v296
    %v329 = vadd.f32 %v88, %v299
    %v330 = vadd.f32 %v89, %v304
    %v331 = vadd.f32 %v90, %v307
    %v332 = vadd.f32 %v91, %v312
    %v333 = vadd.f32 %v92, %v315
    %334 = vst [vmem:[#allocation2] sm:$0xff] %v318
    %335 = vst [vmem:[#allocation2 + $0x8] sm:$0xff] %v319
    %336 = vst [vmem:[#allocation2 + $0x10] sm:$0xff] %v320
    %337 = vst [vmem:[#allocation2 + $0x18] sm:$0xff] %v321
    %338 = vst [vmem:[#allocation2 + $0x20] sm:$0xff] %v322
    %339 = vst [vmem:[#allocation2 + $0x28] sm:$0xff] %v323
    %340 = vst [vmem:[#allocation2 + $0x30] sm:$0xff] %v324
    %341 = vst [vmem:[#allocation2 + $0x38] sm:$0xff] %v325
    %342 = vst [vmem:[#allocation2 + $0x40] sm:$0xff] %v326
    %343 = vst [vmem:[#allocation2 + $0x48] sm:$0xff] %v327
    %344 = vst [vmem:[#allocation2 + $0x50] sm:$0xff] %v328
    %345 = vst [vmem:[#allocation2 + $0x58] sm:$0xff] %v329
    %346 = vst [vmem:[#allocation2 + $0x60] sm:$0xff] %v330
    %347 = vst [vmem:[#allocation2 + $0x68] sm:$0xff] %v331
    %348 = vst [vmem:[#allocation2 + $0x70] sm:$0xff] %v332
    %349 = vst [vmem:[#allocation2 + $0x78] sm:$0xff] %v333
    // Predicated region
    $region30: #{tpu_custom_call.1} parent=1 // pred_check
      %p350 = pneg %p57
    $region31: #{tpu_custom_call.1} parent=1 // pred_check_branch
      %352 = sbr.rel (%p350) target = $region33
    $region32: #{tpu_custom_call.1} parent=1 // pred_region
      %v353 = vld [vmem:[#allocation2] sm:$0xff]
      %v354 = vld [vmem:[#allocation2 + $0x8] sm:$0xff]
      %v355 = vld [vmem:[#allocation2 + $0x10] sm:$0xff]
      %v356 = vld [vmem:[#allocation2 + $0x18] sm:$0xff]
      %v357 = vld [vmem:[#allocation2 + $0x20] sm:$0xff]
      %v358 = vld [vmem:[#allocation2 + $0x28] sm:$0xff]
      %v359 = vld [vmem:[#allocation2 + $0x30] sm:$0xff]
      %v360 = vld [vmem:[#allocation2 + $0x38] sm:$0xff]
      %v361 = vld [vmem:[#allocation2 + $0x40] sm:$0xff]
      %v362 = vld [vmem:[#allocation2 + $0x48] sm:$0xff]
      %v363 = vld [vmem:[#allocation2 + $0x50] sm:$0xff]
      %v364 = vld [vmem:[#allocation2 + $0x58] sm:$0xff]
      %v365 = vld [vmem:[#allocation2 + $0x60] sm:$0xff]
      %v366 = vld [vmem:[#allocation2 + $0x68] sm:$0xff]
      %v367 = vld [vmem:[#allocation2 + $0x70] sm:$0xff]
      %v368 = vld [vmem:[#allocation2 + $0x78] sm:$0xff]
      %v369 = vmax.f32 %v353, 0.0
      %v370 = vmax.f32 %v354, 0.0
      %v371 = vmax.f32 %v355, 0.0
      %v372 = vmax.f32 %v356, 0.0
      %v373 = vmax.f32 %v357, 0.0
      %v374 = vmax.f32 %v358, 0.0
      %v375 = vmax.f32 %v359, 0.0
      %v376 = vmax.f32 %v360, 0.0
      %v377 = vmax.f32 %v361, 0.0
      %v378 = vmax.f32 %v362, 0.0
      %v379 = vmax.f32 %v363, 0.0
      %v380 = vmax.f32 %v364, 0.0
      %v381 = vmax.f32 %v365, 0.0
      %v382 = vmax.f32 %v366, 0.0
      %v383 = vmax.f32 %v367, 0.0
      %v384 = vmax.f32 %v368, 0.0
      %v385 = vpack.c.bf16 %v370, %v369
      %v386 = vpack.c.bf16 %v372, %v371
      %v387 = vpack.c.bf16 %v374, %v373
      %v388 = vpack.c.bf16 %v376, %v375
      %v389 = vpack.c.bf16 %v378, %v377
      %v390 = vpack.c.bf16 %v380, %v379
      %v391 = vpack.c.bf16 %v382, %v381
      %v392 = vpack.c.bf16 %v384, %v383
      %v393 = vld [vmem:[#allocation8] sm:$0xf]
      %v394 = vld [vmem:[#allocation8 + $0x4] sm:$0xf]
      %v395 = vld [vmem:[#allocation8 + $0x8] sm:$0xf]
      %v396 = vld [vmem:[#allocation8 + $0xc] sm:$0xf]
      %v397 = vld [vmem:[#allocation8 + $0x10] sm:$0xf]
      %v398 = vld [vmem:[#allocation8 + $0x14] sm:$0xf]
      %v399 = vld [vmem:[#allocation8 + $0x18] sm:$0xf]
      %v400 = vld [vmem:[#allocation8 + $0x1c] sm:$0xf]
      %v401 = vld [vmem:[#allocation8 + $0x20] sm:$0xf]
      %v402 = vld [vmem:[#allocation8 + $0x24] sm:$0xf]
      %v403 = vld [vmem:[#allocation8 + $0x28] sm:$0xf]
      %v404 = vld [vmem:[#allocation8 + $0x2c] sm:$0xf]
      %v405 = vld [vmem:[#allocation8 + $0x30] sm:$0xf]
      %v406 = vld [vmem:[#allocation8 + $0x34] sm:$0xf]
      %v407 = vld [vmem:[#allocation8 + $0x38] sm:$0xf]
      %v408 = vld [vmem:[#allocation8 + $0x3c] sm:$0xf]
      %v425 = vunpack.c.l.b16 %v393
      %v426 = vunpack.c.l.b16 %v394
      %v427 = vunpack.c.l.b16 %v395
      %v428 = vunpack.c.l.b16 %v396
      %v429 = vunpack.c.l.b16 %v397
      %v430 = vunpack.c.l.b16 %v398
      %v431 = vunpack.c.l.b16 %v399
      %v432 = vunpack.c.l.b16 %v400
      %v433 = vunpack.c.l.b16 %v401
      %v434 = vunpack.c.l.b16 %v402
      %v435 = vunpack.c.l.b16 %v403
      %v436 = vunpack.c.l.b16 %v404
      %v437 = vunpack.c.l.b16 %v405
      %v438 = vunpack.c.l.b16 %v406
      %v439 = vunpack.c.l.b16 %v407
      %v440 = vunpack.c.l.b16 %v408
      %v441 = vpack.c.b16 %v426, %v425
      %v442 = vpack.c.b16 %v428, %v427
      %v443 = vpack.c.b16 %v430, %v429
      %v444 = vpack.c.b16 %v432, %v431
      %v445 = vpack.c.b16 %v434, %v433
      %v446 = vpack.c.b16 %v436, %v435
      %v447 = vpack.c.b16 %v438, %v437
      %v448 = vpack.c.b16 %v440, %v439
      %457 = vmatprep.subr.bf16.mxu0 0
      %458 = vmatpush1.bf16.msra.mxu0 %v441
      %459 = vmatprep.subr.bf16.mxu0 0
      %460 = vmatpush1.bf16.msra.mxu0 %v442
      %461 = vmatprep.subr.bf16.mxu0 0
      %462 = vmatpush1.bf16.msra.mxu0 %v443
      %463 = vmatprep.subr.bf16.mxu0 0
      %464 = vmatpush1.bf16.msra.mxu0 %v444
      %465 = vmatprep.subr.bf16.mxu0 0
      %466 = vmatpush1.bf16.msra.mxu0 %v445
      %467 = vmatprep.subr.bf16.mxu0 0
      %468 = vmatpush1.bf16.msra.mxu0 %v446
      %469 = vmatprep.subr.bf16.mxu0 0
      %470 = vmatpush1.bf16.msra.mxu0 %v447
      %471 = vmatprep.subr.bf16.mxu0 0
      %472 = vmatpush1.bf16.msra.mxu0 %v448
      %473 = vmatprep.subr.bf16.mxu0 0
      %474 = vmatpush1.bf16.msra.mxu0 0
      %475 = vmatprep.subr.bf16.mxu0 0
      %476 = vmatpush1.bf16.msra.mxu0 0
      %477 = vmatprep.subr.bf16.mxu0 0
      %478 = vmatpush1.bf16.msra.mxu0 0
      %479 = vmatprep.subr.bf16.mxu0 0
      %480 = vmatpush1.bf16.msra.mxu0 0
      %481 = vmatprep.subr.bf16.mxu0 0
      %482 = vmatpush1.bf16.msra.mxu0 0
      %483 = vmatprep.subr.bf16.mxu0 0
      %484 = vmatpush1.bf16.msra.mxu0 0
      %485 = vmatprep.subr.bf16.mxu0 0
      %486 = vmatpush1.bf16.msra.mxu0 0
      %487 = vmatprep.subr.bf16.mxu0 0
      %488 = vmatpush1.bf16.msra.mxu0 0
      %489 = vmatprep.mubr.bf16.mxu0 0
      %490 = vmatmul.mubr.bf16.gmra.mrb[0].mxu0 %v385
      %v491 = vpop.f32.mrb[0].mxu0
      %v492 = vadd.f32 0.0, %v491
      %v493 = vpop.f32.mrb[0].mxu0
      %v494 = vpop.f32.mrb[0].mxu0
      %v495 = vadd.f32 0.0, %v494
      %v496 = vpop.f32.mrb[0].mxu0
      %497 = vmatprep.mubr.bf16.mxu0 0
      %498 = vmatmul.mubr.bf16.gmra.mrb[0].mxu0 %v386
      %v499 = vpop.f32.mrb[0].mxu0
      %v500 = vadd.f32 0.0, %v499
      %v501 = vpop.f32.mrb[0].mxu0
      %v502 = vpop.f32.mrb[0].mxu0
      %v503 = vadd.f32 0.0, %v502
      %v504 = vpop.f32.mrb[0].mxu0
      %505 = vmatprep.mubr.bf16.mxu0 0
      %506 = vmatmul.mubr.bf16.gmra.mrb[0].mxu0 %v387
      %v507 = vpop.f32.mrb[0].mxu0
      %v508 = vadd.f32 0.0, %v507
      %v509 = vpop.f32.mrb[0].mxu0
      %v510 = vpop.f32.mrb[0].mxu0
      %v511 = vadd.f32 0.0, %v510
      %v512 = vpop.f32.mrb[0].mxu0
      %513 = vmatprep.mubr.bf16.mxu0 0
      %514 = vmatmul.mubr.bf16.gmra.mrb[0].mxu0 %v388
      %v515 = vpop.f32.mrb[0].mxu0
      %v516 = vadd.f32 0.0, %v515
      %v517 = vpop.f32.mrb[0].mxu0
      %v518 = vpop.f32.mrb[0].mxu0
      %v519 = vadd.f32 0.0, %v518
      %v520 = vpop.f32.mrb[0].mxu0
      %521 = vmatprep.mubr.bf16.mxu0 0
      %522 = vmatmul.mubr.bf16.gmra.mrb[0].mxu0 %v389
      %v523 = vpop.f32.mrb[0].mxu0
      %v524 = vadd.f32 0.0, %v523
      %v525 = vpop.f32.mrb[0].mxu0
      %v526 = vpop.f32.mrb[0].mxu0
      %v527 = vadd.f32 0.0, %v526
      %v528 = vpop.f32.mrb[0].mxu0
      %529 = vmatprep.mubr.bf16.mxu0 0
      %530 = vmatmul.mubr.bf16.gmra.mrb[0].mxu0 %v390
      %v531 = vpop.f32.mrb[0].mxu0
      %v532 = vadd.f32 0.0, %v531
      %v533 = vpop.f32.mrb[0].mxu0
      %v534 = vpop.f32.mrb[0].mxu0
      %v535 = vadd.f32 0.0, %v534
      %v536 = vpop.f32.mrb[0].mxu0
      %537 = vmatprep.mubr.bf16.mxu0 0
      %538 = vmatmul.mubr.bf16.gmra.mrb[0].mxu0 %v391
      %v539 = vpop.f32.mrb[0].mxu0
      %v540 = vadd.f32 0.0, %v539
      %v541 = vpop.f32.mrb[0].mxu0
      %v542 = vpop.f32.mrb[0].mxu0
      %v543 = vadd.f32 0.0, %v542
      %v544 = vpop.f32.mrb[0].mxu0
      %545 = vmatprep.mubr.bf16.mxu0 0
      %546 = vmatmul.mubr.bf16.gmra.mrb[0].mxu0 %v392
      %v547 = vpop.f32.mrb[0].mxu0
      %v548 = vadd.f32 0.0, %v547
      %v549 = vpop.f32.mrb[0].mxu0
      %v550 = vpop.f32.mrb[0].mxu0
      %v551 = vadd.f32 0.0, %v550
      %v552 = vpop.f32.mrb[0].mxu0
      %553 = vdwg.mxu0
      %v554 = vpack.c.bf16 %v495, %v492
      %v555 = vpack.c.bf16 %v503, %v500
      %v556 = vpack.c.bf16 %v511, %v508
      %v557 = vpack.c.bf16 %v519, %v516
      %v558 = vpack.c.bf16 %v527, %v524
      %v559 = vpack.c.bf16 %v535, %v532
      %v560 = vpack.c.bf16 %v543, %v540
      %v561 = vpack.c.bf16 %v551, %v548
      %v570 = vunpack.c.l.b16 %v554
      %v571 = vunpack.c.h.b16 %v554
      %v572 = vunpack.c.l.b16 %v555
      %v573 = vunpack.c.h.b16 %v555
      %v574 = vunpack.c.l.b16 %v556
      %v575 = vunpack.c.h.b16 %v556
      %v576 = vunpack.c.l.b16 %v557
      %v577 = vunpack.c.h.b16 %v557
      %v578 = vunpack.c.l.b16 %v558
      %v579 = vunpack.c.h.b16 %v558
      %v580 = vunpack.c.l.b16 %v559
      %v581 = vunpack.c.h.b16 %v559
      %v582 = vunpack.c.l.b16 %v560
      %v583 = vunpack.c.h.b16 %v560
      %v584 = vunpack.c.l.b16 %v561
      %v585 = vunpack.c.h.b16 %v561
      %v586 = vpack.c.b16 %v570, %v570
      %v587 = vpack.c.b16 %v571, %v571
      %v588 = vpack.c.b16 %v572, %v572
      %v589 = vpack.c.b16 %v573, %v573
      %v590 = vpack.c.b16 %v574, %v574
      %v591 = vpack.c.b16 %v575, %v575
      %v592 = vpack.c.b16 %v576, %v576
      %v593 = vpack.c.b16 %v577, %v577
      %v594 = vpack.c.b16 %v578, %v578
      %v595 = vpack.c.b16 %v579, %v579
      %v596 = vpack.c.b16 %v580, %v580
      %v597 = vpack.c.b16 %v581, %v581
      %v598 = vpack.c.b16 %v582, %v582
      %v599 = vpack.c.b16 %v583, %v583
      %v600 = vpack.c.b16 %v584, %v584
      %v601 = vpack.c.b16 %v585, %v585
      %618 = vst [vmem:[#allocation9] sm:$0xf] %v586
      %619 = vst [vmem:[#allocation9 + $0x4] sm:$0xf] %v587
      %620 = vst [vmem:[#allocation9 + $0x8] sm:$0xf] %v588
      %621 = vst [vmem:[#allocation9 + $0xc] sm:$0xf] %v589
      %622 = vst [vmem:[#allocation9 + $0x10] sm:$0xf] %v590
      %623 = vst [vmem:[#allocation9 + $0x14] sm:$0xf] %v591
      %624 = vst [vmem:[#allocation9 + $0x18] sm:$0xf] %v592
      %625 = vst [vmem:[#allocation9 + $0x1c] sm:$0xf] %v593
      %626 = vst [vmem:[#allocation9 + $0x20] sm:$0xf] %v594
      %627 = vst [vmem:[#allocation9 + $0x24] sm:$0xf] %v595
      %628 = vst [vmem:[#allocation9 + $0x28] sm:$0xf] %v596
      %629 = vst [vmem:[#allocation9 + $0x2c] sm:$0xf] %v597
      %630 = vst [vmem:[#allocation9 + $0x30] sm:$0xf] %v598
      %631 = vst [vmem:[#allocation9 + $0x34] sm:$0xf] %v599
      %632 = vst [vmem:[#allocation9 + $0x38] sm:$0xf] %v600
      %633 = vst [vmem:[#allocation9 + $0x3c] sm:$0xf] %v601
    $region33: #{tpu_custom_call.1} parent=1 // pred_fallthru
      _
    // Predicated region
    $region34: #{tpu_custom_call.1} parent=1 // pred_check
      _
    $region35: #{tpu_custom_call.1} parent=1 // pred_check_branch
      %635 = sbr.rel (0) target = $region37
    $region36: #{tpu_custom_call.1} parent=1 // pred_region
      %s637 = ssub.s32 1024, 1024
      %638 = vsyncadd [#allocation5], %s637
      %s639 = sshll.u32 [#allocation9], 4
      %s640 = int_to_ptr.vmem [resolvable:$true] %s639
      %645 = dma.vmem_to_hbm [thread:$0]  %s640, 1024, %s3, [#allocation5], 64, 64, 4
    $region37: #{tpu_custom_call.1} parent=1 // pred_fallthru
      _
    // Predicated region
    $region38: #{tpu_custom_call.1} parent=1 // pred_check
      _
    $region39: #{tpu_custom_call.1} parent=1 // pred_check_branch
      %647 = sbr.rel (0) target = $region41
    $region40: #{tpu_custom_call.1} parent=1 // pred_region
      %648 = dma.done [#allocation5], 1024
    $region41: #{tpu_custom_call.1} parent=1 // pred_fallthru
      _
    %649 = vsyncpa [#allocation4], 1
    %650 = vsyncpa [#allocation7], 1
    %651 = vsyncpa [#allocation5], 1

</llo_original>
